<compile_context>
chip_gen: v7x
topology: tpu7x:2x2x1
jax: 0.10.0
libtpu: 0.0.40
codegen_flags: <defaults>
</compile_context>

<pallas_src>
import jax
import jax.numpy as jnp
import numpy as np
from jax.experimental import pallas as pl
from jax.experimental.pallas import tpu as pltpu

# ---------------------------------------------------------------------------
# Synthetic feature-group layout (mirrors MultiHeadConv1DModel.__init__)
# ---------------------------------------------------------------------------
FEAT = 16          # per-channel feature length == Conv1d spatial dim L
EOG_SIZE = 36
OUTPUT_SIZE = 1    # task_type == 'binary'
HEAD_OUT = {'eeg2': 32, 'eeg5': 32, 'fore2': 16, 'fore5': 16}
HEAD_ORDER_CONV = ('eeg2', 'eeg5', 'fore2', 'fore5')   # ModuleDict order (conv heads)
TOTAL_FEATS = 32 + 32 + 16 + 16 + 64                   # = 160 combined features


def build_feature_groups():
    fg = {}
    off = 0
    names = (['EEG_2Hz_Channel_%d' % i for i in range(1, 3)]
             + ['Forehead_EEG_2Hz_Channel_%d' % i for i in range(1, 3)]
             + ['EEG_5Bands_Channel_%d' % i for i in range(1, 3)]
             + ['Forehead_EEG_5Bands_Channel_%d' % i for i in range(1, 3)])
    for n in names:
        fg[n] = (off, FEAT)
        off += FEAT
    fg['EOG'] = (off, EOG_SIZE)
    off += EOG_SIZE
    return fg, off


def compute_slices(feature_groups):
    # Exact copy of the PyTorch __init__ grouping logic (substring matching
    # means Forehead channels also fall into the eeg2/eeg5 groups, as in the
    # original module).
    groups = {
        'eeg2': sorted(k for k in feature_groups if 'EEG_2Hz_Channel' in k),
        'eeg5': sorted(k for k in feature_groups if 'EEG_5Bands_Channel' in k),
        'fore2': sorted(k for k in feature_groups if 'Forehead_EEG_2Hz_Channel' in k),
        'fore5': sorted(k for k in feature_groups if 'Forehead_EEG_5Bands_Channel' in k),
    }
    slices = {}
    for name, keys in groups.items():
        start = min(feature_groups[k][0] for k in keys)
        size = sum(feature_groups[k][1] for k in keys)
        n_ch = len(keys)
        feat = feature_groups[keys[0]][1]
        slices[name] = (start, size, n_ch, feat)
    return slices


# ---------------------------------------------------------------------------
# Pallas kernel: in-kernel im2col + fused conv heads + EOG linear + classifier
# ---------------------------------------------------------------------------
def _multihead_kernel(x_ch_ref, x_eog_ref,
                      w_conv_ref, b_conv_ref,
                      w_eog_ref, b_eog_ref,
                      w_fc1_ref, b_fc1_ref,
                      w_fc2_ref, b_fc2_ref,
                      out_ref):
    tile_b, L, C = x_ch_ref.shape          # (tile_b, 16, 12)
    n_conv_out = w_conv_ref.shape[-1]      # 96

    # ---- in-kernel im2col for kernel_size=3, padding=1 -------------------
    x3 = x_ch_ref[...]                                           # (tile_b, L, C)
    zpad = jnp.zeros((tile_b, 1, C), dtype=x3.dtype)
    x_prev = jnp.concatenate([zpad, x3[:, :L - 1, :]], axis=1)   # x[l-1]
    x_next = jnp.concatenate([x3[:, 1:, :], zpad], axis=1)       # x[l+1]
    x_taps = jnp.concatenate([x_prev, x3, x_next], axis=2)       # (tile_b, L, 3C)

    # ---- all 4 conv heads as ONE MXU pass over the block-diagonal weight --
    y = jnp.dot(x_taps.reshape(tile_b * L, 3 * C), w_conv_ref[...],
                preferred_element_type=jnp.float32) + b_conv_ref[...]
    y = jnp.maximum(y, 0.0)
    pooled = jnp.mean(y.reshape(tile_b, L, n_conv_out), axis=1)  # (tile_b, 96) f32

    # ---- EOG head: Linear + ReLU ------------------------------------------
    f_eog = jnp.maximum(
        jnp.dot(x_eog_ref[...], w_eog_ref[...],
                preferred_element_type=jnp.float32) + b_eog_ref[...],
        0.0)                                                     # (tile_b, 64) f32

    # ---- classifier fc1: split at row 96 -> no lane-axis concat -----------
    w_fc1 = w_fc1_ref[...]                                       # (160, 128)
    h = jnp.dot(pooled.astype(w_fc1.dtype), w_fc1[:n_conv_out, :],
                preferred_element_type=jnp.float32)
    h = h + jnp.dot(f_eog.astype(w_fc1.dtype), w_fc1[n_conv_out:, :],
                    preferred_element_type=jnp.float32)
    h = jnp.maximum(h + b_fc1_ref[...], 0.0)                     # (tile_b, 128)
    # TODO(synk): nn.Dropout(0.3) is identity at inference; training-mode dropout not implemented.

    # ---- fc2, lane-dense logits: (OUTPUT_SIZE, tile_b), batch on lane axis -
    logits = jax.lax.dot_general(
        w_fc2_ref[...], h.astype(w_fc2_ref.dtype),
        dimension_numbers=(((1,), (1,)), ((), ())),
        preferred_element_type=jnp.float32) + b_fc2_ref[...]
    out_ref[...] = jax.nn.sigmoid(logits)                        # task_type == 'binary'


def _block_diag(blocks):
    """Dense block-diagonal assembly (wrapper-side, XLA)."""
    rows = sum(b.shape[0] for b in blocks)
    cols = sum(b.shape[1] for b in blocks)
    out = jnp.zeros((rows, cols), blocks[0].dtype)
    r = c = 0
    for b in blocks:
        out = out.at[r:r + b.shape[0], c:c + b.shape[1]].set(b)
        r += b.shape[0]
        c += b.shape[1]
    return out


def _round_up(v, m):
    return ((v + m - 1) // m) * m


# ---------------------------------------------------------------------------
# Wrapper: slicing, weight packing, dtype casting, batch grid
# ---------------------------------------------------------------------------
def multihead_conv1d_forward(x, params, slices, eog_slice, output_size=OUTPUT_SIZE,
                             compute_dtype=jnp.bfloat16):
    B = x.shape[0]
    L = FEAT

    # ---- conv inputs: pack all 12 head channels into one channels-last slab
    chans = []
    for name in HEAD_ORDER_CONV:
        start, size, n_ch, feat = slices[name]
        chans.append(x[:, start:start + size].reshape(B, n_ch, feat))   # (B, C_h, L)
    x_chl = jnp.transpose(jnp.concatenate(chans, axis=1), (0, 2, 1))    # (B, L, 12)
    x_chl = x_chl.astype(compute_dtype)
    C = x_chl.shape[-1]

    eog_start, eog_size = eog_slice
    x_eog = x[:, eog_start:eog_start + eog_size].astype(compute_dtype)  # (B, 36)

    # ---- pack conv weights into one block-diagonal (3*12, 96) matrix -------
    taps = [_block_diag([params[n][0][:, :, k].T for n in HEAD_ORDER_CONV])
            for k in range(3)]
    w_conv = jnp.concatenate(taps, axis=0).astype(compute_dtype)        # (36, 96)
    b_conv = jnp.concatenate([params[n][1] for n in HEAD_ORDER_CONV]
                             ).reshape(1, -1).astype(jnp.float32)       # (1, 96)

    w_eog, b_eog = params['eog']
    w_fc1, b_fc1 = params['fc1']
    w_fc2, b_fc2 = params['fc2']

    # ---- batch tiling: >=2 tiles for B>256 (v7x dual TC), tile_b % 128 == 0
    if B <= 256:
        tile_b = B
    else:
        tile_b = min(512, _round_up(pl.cdiv(B, 2), 128))
    B_pad = _round_up(B, tile_b)
    n_tiles = B_pad // tile_b
    if B_pad != B:
        x_chl = jnp.pad(x_chl, ((0, B_pad - B), (0, 0), (0, 0)))
        x_eog = jnp.pad(x_eog, ((0, B_pad - B), (0, 0)))

    args = (x_chl, x_eog,
            w_conv, b_conv,
            w_eog.T.astype(compute_dtype), b_eog.reshape(1, -1).astype(jnp.float32),
            w_fc1.T.astype(compute_dtype), b_fc1.reshape(1, -1).astype(jnp.float32),
            w_fc2.astype(compute_dtype), b_fc2.reshape(-1, 1).astype(jnp.float32))

    # Grid-invariant weights use whole-array blocks + constant index_map (no re-DMA).
    weight_specs = [pl.BlockSpec(a.shape, lambda i: (0, 0)) for a in args[2:]]
    in_specs = (
        [pl.BlockSpec((tile_b, L, C), lambda i: (i, 0, 0)),
         pl.BlockSpec((tile_b, x_eog.shape[1]), lambda i: (i, 0))]
        + weight_specs
    )
    out_spec = pl.BlockSpec((output_size, tile_b), lambda i: (0, i))

    flops = 2 * B_pad * (L * (3 * C) * w_conv.shape[1]
                         + w_eog.shape[1] * w_eog.shape[0]
                         + w_fc1.shape[1] * w_fc1.shape[0]
                         + w_fc2.shape[0] * w_fc2.shape[1])
    bytes_accessed = int(sum(int(a.size) * a.dtype.itemsize for a in args)
                         + output_size * B_pad * 4)
    cost = pl.CostEstimate(flops=int(flops),
                           transcendentals=int(B_pad * output_size),
                           bytes_accessed=bytes_accessed)

    out_t = pl.pallas_call(
        _multihead_kernel,
        grid=(n_tiles,),
        out_shape=jax.ShapeDtypeStruct((output_size, B_pad), jnp.float32),
        in_specs=in_specs,
        out_specs=out_spec,
        compiler_params=pltpu.CompilerParams(
            dimension_semantics=("parallel",),
            vmem_limit_bytes=64 * 1024 * 1024),
        cost_estimate=cost,
    )(*args)

    return out_t[:, :B].T                                               # (B, output_size)


# ---------------------------------------------------------------------------
# Pure-JAX reference (uses lax.conv to validate the fused conv-as-matmul)
# ---------------------------------------------------------------------------
def reference_forward(x, params, slices, eog_slice):
    B = x.shape[0]
    feats = []
    for name in HEAD_ORDER_CONV:
        start, size, n_ch, feat = slices[name]
        xi = x[:, start:start + size].reshape(B, n_ch, feat)
        W, b = params[name]
        y = jax.lax.conv_general_dilated(xi, W, window_strides=(1,), padding=((1, 1),),
                                         dimension_numbers=('NCH', 'OIH', 'NCH'))
        y = jax.nn.relu(y + b[None, :, None])
        feats.append(jnp.mean(y, axis=-1))
    eog_start, eog_size = eog_slice
    W, b = params['eog']
    feats.append(jax.nn.relu(x[:, eog_start:eog_start + eog_size] @ W.T + b))
    combined = jnp.concatenate(feats, axis=1)
    W1, b1 = params['fc1']
    W2, b2 = params['fc2']
    h = jax.nn.relu(combined @ W1.T + b1)
    return jax.nn.sigmoid(h @ W2.T + b2)


# ---------------------------------------------------------------------------
if __name__ == "__main__":
    feature_groups, total_input = build_feature_groups()
    slices = compute_slices(feature_groups)
    eog_slice = feature_groups['EOG']

    key = jax.random.PRNGKey(0)
    keys = jax.random.split(key, 16)

    def init(k, shape, scale=0.1):
        return (scale * jax.random.normal(k, shape)).astype(jnp.float32)

    params = {}
    ki = 0
    for name in HEAD_ORDER_CONV:
        Cn = slices[name][2]
        O = HEAD_OUT[name]
        params[name] = (init(keys[ki], (O, Cn, 3)), init(keys[ki + 1], (O,)))
        ki += 2
    params['eog'] = (init(keys[ki], (64, eog_slice[1])), init(keys[ki + 1], (64,))); ki += 2
    params['fc1'] = (init(keys[ki], (128, TOTAL_FEATS)), init(keys[ki + 1], (128,))); ki += 2
    params['fc2'] = (init(keys[ki], (OUTPUT_SIZE, 128)), init(keys[ki + 1], (OUTPUT_SIZE,))); ki += 2

    # --- test 1: tiny batch, f32 path, tight tolerance ----------------------
    B = 2
    x = jax.random.normal(keys[ki], (B, total_input), dtype=jnp.float32)
    out = multihead_conv1d_forward(x, params, slices, eog_slice,
                                   compute_dtype=jnp.float32)
    out = jax.block_until_ready(out)
    ref = reference_forward(x, params, slices, eog_slice)
    assert out.shape == (B, OUTPUT_SIZE)
    np.testing.assert_allclose(np.asarray(out), np.asarray(ref), rtol=1e-5, atol=1e-5)

    # --- test 2: multi-tile grid + padding, default bf16 fast path ----------
    B2 = 384                        # -> tile_b=256, B_pad=512, 2 grid tiles
    x2 = jax.random.normal(keys[ki + 1], (B2, total_input), dtype=jnp.float32)
    out2 = jax.block_until_ready(
        multihead_conv1d_forward(x2, params, slices, eog_slice))
    ref2 = reference_forward(x2, params, slices, eog_slice)
    assert out2.shape == (B2, OUTPUT_SIZE)
    np.testing.assert_allclose(np.asarray(out2), np.asarray(ref2), rtol=3e-2, atol=3e-2)

    print("KERNEL_OK")
</pallas_src>

<mosaic_0001>
module attributes {stable_mosaic.version = 11 : i64} {
  func.func @_multihead_kernel(%arg0: i32, %arg1: memref<2x16x12xf32, #tpu.memory_space<vmem>>, %arg2: memref<2x36xf32, #tpu.memory_space<vmem>>, %arg3: memref<36x96xf32, #tpu.memory_space<vmem>>, %arg4: memref<1x96xf32, #tpu.memory_space<vmem>>, %arg5: memref<36x64xf32, #tpu.memory_space<vmem>>, %arg6: memref<1x64xf32, #tpu.memory_space<vmem>>, %arg7: memref<160x128xf32, #tpu.memory_space<vmem>>, %arg8: memref<1x128xf32, #tpu.memory_space<vmem>>, %arg9: memref<1x128xf32, #tpu.memory_space<vmem>>, %arg10: memref<1x1xf32, #tpu.memory_space<vmem>>, %arg11: memref<1x2xf32, #tpu.memory_space<vmem>>) attributes {dimension_semantics = [#tpu.dimension_semantics<parallel>], iteration_bounds = array<i64: 1>, scalar_prefetch = 0 : i64, scratch_operands = 0 : i64, tpu.core_type = #tpu.core_type<tc>, window_params = [{transform_indices = @transform_0, window_bounds = array<i64: 2, 16, 12>}, {transform_indices = @transform_1, window_bounds = array<i64: 2, 36>}, {pipeline_mode = #tpu.pipeline_mode<synchronous>, transform_indices = @transform_2, window_bounds = array<i64: 36, 96>}, {pipeline_mode = #tpu.pipeline_mode<synchronous>, transform_indices = @transform_3, window_bounds = array<i64: 1, 96>}, {pipeline_mode = #tpu.pipeline_mode<synchronous>, transform_indices = @transform_4, window_bounds = array<i64: 36, 64>}, {pipeline_mode = #tpu.pipeline_mode<synchronous>, transform_indices = @transform_5, window_bounds = array<i64: 1, 64>}, {pipeline_mode = #tpu.pipeline_mode<synchronous>, transform_indices = @transform_6, window_bounds = array<i64: 160, 128>}, {pipeline_mode = #tpu.pipeline_mode<synchronous>, transform_indices = @transform_7, window_bounds = array<i64: 1, 128>}, {pipeline_mode = #tpu.pipeline_mode<synchronous>, transform_indices = @transform_8, window_bounds = array<i64: 1, 128>}, {pipeline_mode = #tpu.pipeline_mode<synchronous>, transform_indices = @transform_9, window_bounds = array<i64: 1, 1>}, {transform_indices = @transform_10, window_bounds = array<i64: 1, 2>}]} {
    %c0 = arith.constant 0 : index
    %c0_0 = arith.constant 0 : index
    %c0_1 = arith.constant 0 : index
    %0 = vector.load %arg1[%c0, %c0_0, %c0_1] : memref<2x16x12xf32, #tpu.memory_space<vmem>>, vector<2x16x12xf32>
    %cst = arith.constant 0.000000e+00 : f32
    %1 = vector.broadcast %cst : f32 to vector<2x1x12xf32>
    %2 = vector.extract_strided_slice %0 {offsets = [0, 0, 0], sizes = [2, 15, 12], strides = [1, 1, 1]} : vector<2x16x12xf32> to vector<2x15x12xf32>
    %3 = tpu.concatenate %1, %2 in 1 : vector<2x1x12xf32>, vector<2x15x12xf32> -> vector<2x16x12xf32>
    %4 = vector.extract_strided_slice %0 {offsets = [0, 1, 0], sizes = [2, 15, 12], strides = [1, 1, 1]} : vector<2x16x12xf32> to vector<2x15x12xf32>
    %5 = tpu.concatenate %4, %1 in 1 : vector<2x15x12xf32>, vector<2x1x12xf32> -> vector<2x16x12xf32>
    %6 = tpu.concatenate %3, %0, %5 in 2 : vector<2x16x12xf32>, vector<2x16x12xf32>, vector<2x16x12xf32> -> vector<2x16x36xf32>
    %7 = vector.shape_cast %6 : vector<2x16x36xf32> to vector<32x36xf32>
    %c0_2 = arith.constant 0 : index
    %c0_3 = arith.constant 0 : index
    %8 = vector.load %arg3[%c0_2, %c0_3] : memref<36x96xf32, #tpu.memory_space<vmem>>, vector<36x96xf32>
    %cst_4 = arith.constant dense<0.000000e+00> : vector<32x96xf32>
    %9 = tpu.matmul %7, %8, %cst_4 {dimension_numbers = #tpu.dot_dimension_numbers<[1], [0], [0], [1], [0, 0, 1, 1], [], []>} : vector<32x36xf32>, vector<36x96xf32>, vector<32x96xf32> -> vector<32x96xf32>
    %c0_5 = arith.constant 0 : index
    %c0_6 = arith.constant 0 : index
    %10 = vector.load %arg4[%c0_5, %c0_6] : memref<1x96xf32, #tpu.memory_space<vmem>>, vector<1x96xf32>
    %11 = vector.broadcast %10 : vector<1x96xf32> to vector<32x96xf32>
    %12 = arith.addf %9, %11 : vector<32x96xf32>
    %cst_7 = arith.constant 0.000000e+00 : f32
    %13 = vector.broadcast %cst_7 : f32 to vector<32x96xf32>
    %14 = arith.maximumf %12, %13 : vector<32x96xf32>
    %15 = vector.shape_cast %14 : vector<32x96xf32> to vector<2x16x96xf32>
    %cst_8 = arith.constant dense<0.000000e+00> : vector<2x96xf32>
    %16 = vector.multi_reduction <add>, %15, %cst_8 [1] : vector<2x16x96xf32> to vector<2x96xf32>
    %cst_9 = arith.constant 1.600000e+01 : f32
    %17 = vector.broadcast %cst_9 : f32 to vector<2x96xf32>
    %18 = arith.divf %16, %17 : vector<2x96xf32>
    %c0_10 = arith.constant 0 : index
    %c0_11 = arith.constant 0 : index
    %19 = vector.load %arg2[%c0_10, %c0_11] : memref<2x36xf32, #tpu.memory_space<vmem>>, vector<2x36xf32>
    %c0_12 = arith.constant 0 : index
    %c0_13 = arith.constant 0 : index
    %20 = vector.load %arg5[%c0_12, %c0_13] : memref<36x64xf32, #tpu.memory_space<vmem>>, vector<36x64xf32>
    %cst_14 = arith.constant dense<0.000000e+00> : vector<2x64xf32>
    %21 = tpu.matmul %19, %20, %cst_14 {dimension_numbers = #tpu.dot_dimension_numbers<[1], [0], [0], [1], [0, 0, 1, 1], [], []>} : vector<2x36xf32>, vector<36x64xf32>, vector<2x64xf32> -> vector<2x64xf32>
    %c0_15 = arith.constant 0 : index
    %c0_16 = arith.constant 0 : index
    %22 = vector.load %arg6[%c0_15, %c0_16] : memref<1x64xf32, #tpu.memory_space<vmem>>, vector<1x64xf32>
    %23 = vector.broadcast %22 : vector<1x64xf32> to vector<2x64xf32>
    %24 = arith.addf %21, %23 : vector<2x64xf32>
    %cst_17 = arith.constant 0.000000e+00 : f32
    %25 = vector.broadcast %cst_17 : f32 to vector<2x64xf32>
    %26 = arith.maximumf %24, %25 : vector<2x64xf32>
    %c0_18 = arith.constant 0 : index
    %c0_19 = arith.constant 0 : index
    %27 = vector.load %arg7[%c0_18, %c0_19] : memref<160x128xf32, #tpu.memory_space<vmem>>, vector<160x128xf32>
    %28 = vector.extract_strided_slice %27 {offsets = [0, 0], sizes = [96, 128], strides = [1, 1]} : vector<160x128xf32> to vector<96x128xf32>
    %cst_20 = arith.constant dense<0.000000e+00> : vector<2x128xf32>
    %29 = tpu.matmul %18, %28, %cst_20 {dimension_numbers = #tpu.dot_dimension_numbers<[1], [0], [0], [1], [0, 0, 1, 1], [], []>} : vector<2x96xf32>, vector<96x128xf32>, vector<2x128xf32> -> vector<2x128xf32>
    %30 = vector.extract_strided_slice %27 {offsets = [96, 0], sizes = [64, 128], strides = [1, 1]} : vector<160x128xf32> to vector<64x128xf32>
    %cst_21 = arith.constant dense<0.000000e+00> : vector<2x128xf32>
    %31 = tpu.matmul %26, %30, %cst_21 {dimension_numbers = #tpu.dot_dimension_numbers<[1], [0], [0], [1], [0, 0, 1, 1], [], []>} : vector<2x64xf32>, vector<64x128xf32>, vector<2x128xf32> -> vector<2x128xf32>
    %32 = arith.addf %29, %31 : vector<2x128xf32>
    %c0_22 = arith.constant 0 : index
    %c0_23 = arith.constant 0 : index
    %33 = vector.load %arg8[%c0_22, %c0_23] : memref<1x128xf32, #tpu.memory_space<vmem>>, vector<1x128xf32>
    %34 = vector.broadcast %33 : vector<1x128xf32> to vector<2x128xf32>
    %35 = arith.addf %32, %34 : vector<2x128xf32>
    %cst_24 = arith.constant 0.000000e+00 : f32
    %36 = vector.broadcast %cst_24 : f32 to vector<2x128xf32>
    %37 = arith.maximumf %35, %36 : vector<2x128xf32>
    %c0_25 = arith.constant 0 : index
    %c0_26 = arith.constant 0 : index
    %38 = vector.load %arg9[%c0_25, %c0_26] : memref<1x128xf32, #tpu.memory_space<vmem>>, vector<1x128xf32>
    %cst_27 = arith.constant dense<0.000000e+00> : vector<1x2xf32>
    %39 = tpu.matmul %38, %37, %cst_27 {dimension_numbers = #tpu.dot_dimension_numbers<[1], [1], [0], [0], [0, 0, 1, 0], [], []>} : vector<1x128xf32>, vector<2x128xf32>, vector<1x2xf32> -> vector<1x2xf32>
    %c0_28 = arith.constant 0 : index
    %c0_29 = arith.constant 0 : index
    %40 = vector.load %arg10[%c0_28, %c0_29] : memref<1x1xf32, #tpu.memory_space<vmem>>, vector<1x1xf32>
    %41 = vector.broadcast %40 : vector<1x1xf32> to vector<1x2xf32>
    %42 = arith.addf %39, %41 : vector<1x2xf32>
    %43 = arith.negf %42 : vector<1x2xf32>
    %44 = math.exp %43 : vector<1x2xf32>
    %cst_30 = arith.constant 1.000000e+00 : f32
    %45 = vector.broadcast %cst_30 : f32 to vector<1x2xf32>
    %46 = arith.addf %45, %44 : vector<1x2xf32>
    %47 = arith.divf %45, %46 : vector<1x2xf32>
    %c0_31 = arith.constant 0 : index
    %c0_32 = arith.constant 0 : index
    %48 = vector.load %arg11[%c0_31, %c0_32] : memref<1x2xf32, #tpu.memory_space<vmem>>, vector<1x2xf32>
    tpu.vector_store %arg11[%c0_31, %c0_32], %47 {strides = array<i32>} : memref<1x2xf32, #tpu.memory_space<vmem>>, vector<1x2xf32>,
    return
  }
  func.func @transform_0(%arg0: i32) -> (i32, i32, i32) {
    %c0_i32 = arith.constant 0 : i32
    %c0_i32_0 = arith.constant 0 : i32
    %c0_i32_1 = arith.constant 0 : i32
    return %arg0, %c0_i32, %c0_i32_0 : i32, i32, i32
  }
  func.func @transform_1(%arg0: i32) -> (i32, i32) {
    %c0_i32 = arith.constant 0 : i32
    %c0_i32_0 = arith.constant 0 : i32
    return %arg0, %c0_i32 : i32, i32
  }
  func.func @transform_2(%arg0: i32) -> (i32, i32) {
    %c0_i32 = arith.constant 0 : i32
    %c0_i32_0 = arith.constant 0 : i32
    %c0_i32_1 = arith.constant 0 : i32
    return %c0_i32, %c0_i32_0 : i32, i32
  }
  func.func @transform_3(%arg0: i32) -> (i32, i32) {
    %c0_i32 = arith.constant 0 : i32
    %c0_i32_0 = arith.constant 0 : i32
    %c0_i32_1 = arith.constant 0 : i32
    return %c0_i32, %c0_i32_0 : i32, i32
  }
  func.func @transform_4(%arg0: i32) -> (i32, i32) {
    %c0_i32 = arith.constant 0 : i32
    %c0_i32_0 = arith.constant 0 : i32
    %c0_i32_1 = arith.constant 0 : i32
    return %c0_i32, %c0_i32_0 : i32, i32
  }
  func.func @transform_5(%arg0: i32) -> (i32, i32) {
    %c0_i32 = arith.constant 0 : i32
    %c0_i32_0 = arith.constant 0 : i32
    %c0_i32_1 = arith.constant 0 : i32
    return %c0_i32, %c0_i32_0 : i32, i32
  }
  func.func @transform_6(%arg0: i32) -> (i32, i32) {
    %c0_i32 = arith.constant 0 : i32
    %c0_i32_0 = arith.constant 0 : i32
    %c0_i32_1 = arith.constant 0 : i32
    return %c0_i32, %c0_i32_0 : i32, i32
  }
  func.func @transform_7(%arg0: i32) -> (i32, i32) {
    %c0_i32 = arith.constant 0 : i32
    %c0_i32_0 = arith.constant 0 : i32
    %c0_i32_1 = arith.constant 0 : i32
    return %c0_i32, %c0_i32_0 : i32, i32
  }
  func.func @transform_8(%arg0: i32) -> (i32, i32) {
    %c0_i32 = arith.constant 0 : i32
    %c0_i32_0 = arith.constant 0 : i32
    %c0_i32_1 = arith.constant 0 : i32
    return %c0_i32, %c0_i32_0 : i32, i32
  }
  func.func @transform_9(%arg0: i32) -> (i32, i32) {
    %c0_i32 = arith.constant 0 : i32
    %c0_i32_0 = arith.constant 0 : i32
    %c0_i32_1 = arith.constant 0 : i32
    return %c0_i32, %c0_i32_0 : i32, i32
  }
  func.func @transform_10(%arg0: i32) -> (i32, i32) {
    %c0_i32 = arith.constant 0 : i32
    %c0_i32_0 = arith.constant 0 : i32
    return %c0_i32, %arg0 : i32, i32
  }
}

</mosaic_0001>

<llo_original>
// kernel: tpu_custom_call.1
$region0: #{tpu_custom_call.1}
  #allocation0 [shape = 'u32[]', space=smem, size = 0x4, offset = 0x4, fixed_abs, tag = 'smem constant byte address 0x4 - core index']
  #allocation1 [shape = 'u32[144,128]{1,0:T(1,128)}', space=vmem, size = 0x12000, scoped, tag = 'internal scratch']
  #allocation2 [shape = 'f32[1,1]{1,0:T(1,128)S(1)}', space=vmem, size = 0x200, scoped, tag = 'scoped memory for tpu_custom_call.1']
  %s0 = inlined_call_operand.hbm [shape: f32[2,16,12], index: 0, kind: input, shape index: {}]
  %s1 = inlined_call_operand.hbm [shape: f32[2,36], index: 1, kind: input, shape index: {}]
  %s2 = inlined_call_operand.hbm [shape: f32[36,96], index: 2, kind: input, shape index: {}]
  %s3 = inlined_call_operand.hbm [shape: f32[1,96], index: 3, kind: input, shape index: {}]
  %s4 = inlined_call_operand.hbm [shape: f32[36,64], index: 4, kind: input, shape index: {}]
  %s5 = inlined_call_operand.hbm [shape: f32[1,64], index: 5, kind: input, shape index: {}]
  %s6 = inlined_call_operand.hbm [shape: f32[160,128], index: 6, kind: input, shape index: {}]
  %s7 = inlined_call_operand.hbm [shape: f32[1,128], index: 7, kind: input, shape index: {}]
  %s8 = inlined_call_operand.hbm [shape: f32[1,128], index: 8, kind: input, shape index: {}]
  %s9 = inlined_call_operand.<no memory space> [shape: f32[1,1], index: 9, kind: input, shape index: {}]
  %s10 = inlined_call_operand.hbm [shape: f32[1,2], index: 10, kind: output, shape index: {}]
  %s11 = sld [smem:[#allocation0]]
  $region86: #{tpu_custom_call.1} parent=0
    _
  %s13 = ssub.s32 1, %s11
  %s14 = scalar_select 0, %s13, %s11
  %v15 = vstv %s9
  %16 = vst [vmem:[#allocation2] sm:$0x1] %v15
  $region1: #{tpu_custom_call.1} parent=0
    #allocation3 [shape = 'u8[16384]{0}', space=vmem, size = 0x4000, scoped, tag = 'input window, operand 0, single buffered']
    #allocation4 [shape = 's32[1]{0}', space=sflag, size = 0x4, scoped, tag = 'scoped memory for tpu_custom_call.1']
    #allocation5 [shape = 's32[1]{0}', space=sflag, size = 0x4, scoped, tag = 'scoped memory for tpu_custom_call.1']
    #allocation6 [shape = 'u8[1024]{0}', space=vmem, size = 0x400, scoped, tag = 'input window, operand 1, single buffered']
    #allocation7 [shape = 's32[1]{0}', space=sflag, size = 0x4, scoped, tag = 'scoped memory for tpu_custom_call.1']
    #allocation8 [shape = 'u8[20480]{0}', space=vmem, size = 0x5000, scoped, tag = 'input window, operand 2, single buffered']
    #allocation9 [shape = 'u8[512]{0}', space=vmem, size = 0x400, scoped, tag = 'input window, operand 3, single buffered']
    #allocation10 [shape = 's32[1]{0}', space=sflag, size = 0x4, scoped, tag = 'scoped memory for tpu_custom_call.1']
    #allocation11 [shape = 'u8[20480]{0}', space=vmem, size = 0x5000, scoped, tag = 'input window, operand 4, single buffered']
    #allocation12 [shape = 'u8[512]{0}', space=vmem, size = 0x400, scoped, tag = 'input window, operand 5, single buffered']
    #allocation13 [shape = 's32[1]{0}', space=sflag, size = 0x4, scoped, tag = 'scoped memory for tpu_custom_call.1']
    #allocation14 [shape = 'u8[81920]{0}', space=vmem, size = 0x14000, scoped, tag = 'input window, operand 6, single buffered']
    #allocation15 [shape = 'u8[512]{0}', space=vmem, size = 0x400, scoped, tag = 'input window, operand 7, single buffered']
    #allocation16 [shape = 's32[1]{0}', space=sflag, size = 0x4, scoped, tag = 'scoped memory for tpu_custom_call.1']
    #allocation17 [shape = 'u8[512]{0}', space=vmem, size = 0x400, scoped, tag = 'input window, operand 8, single buffered']
    #allocation18 [shape = 'u8[512]{0}', space=vmem, size = 0x400, scoped, tag = 'output window, operand 0, single buffered']
    %17 = vsyncpa [#allocation4], 0
    %18 = vsyncpa [#allocation7], 0
    %19 = vsyncpa [#allocation10], 0
    %20 = vsyncpa [#allocation13], 0
    %21 = vsyncpa [#allocation16], 0
    %22 = vsyncpa [#allocation5], 0
    // Predicated region
    $region2: #{tpu_custom_call.1} parent=1 // pred_check
      _
    $region3: #{tpu_custom_call.1} parent=1 // pred_check_branch
      %24 = sbr.rel (0) target = $region5
    $region4: #{tpu_custom_call.1} parent=1 // pred_region
      %s26 = ssub.s32 512, 512
      %27 = vsyncadd [#allocation4], %s26
      %s28 = sshll.u32 [#allocation3], 4
      %s29 = int_to_ptr.vmem [resolvable:$true] %s28
      %34 = dma.hbm_to_vmem [thread:$0]  %s0, 512, %s29, [#allocation4], 128, 128, 8
    $region5: #{tpu_custom_call.1} parent=1 // pred_fallthru
      _
    // Predicated region
    $region6: #{tpu_custom_call.1} parent=1 // pred_check
      _
    $region7: #{tpu_custom_call.1} parent=1 // pred_check_branch
      %36 = sbr.rel (0) target = $region9
    $region8: #{tpu_custom_call.1} parent=1 // pred_region
      %s38 = ssub.s32 32, 32
      %39 = vsyncadd [#allocation7], %s38
      %s41 = sshll.u32 [#allocation6], 4
      %s42 = int_to_ptr.vmem [resolvable:$true] %s41
      %44 = dma.hbm_to_vmem [thread:$0]  %s1, 32, %s42, [#allocation7]
    $region9: #{tpu_custom_call.1} parent=1 // pred_fallthru
      _
    // Predicated region
    $region10: #{tpu_custom_call.1} parent=1 // pred_check
      _
    $region11: #{tpu_custom_call.1} parent=1 // pred_check_branch
      %46 = sbr.rel (0) target = $region13
    $region12: #{tpu_custom_call.1} parent=1 // pred_region
      %s48 = ssub.s32 640, 640
      %49 = vsyncadd [#allocation7], %s48
      %s50 = sshll.u32 [#allocation8], 4
      %s51 = int_to_ptr.vmem [resolvable:$true] %s50
      %56 = dma.hbm_to_vmem [thread:$0]  %s2, 640, %s51, [#allocation7], 128, 128, 8
    $region13: #{tpu_custom_call.1} parent=1 // pred_fallthru
      _
    // Predicated region
    $region14: #{tpu_custom_call.1} parent=1 // pred_check
      _
    $region15: #{tpu_custom_call.1} parent=1 // pred_check_branch
      %58 = sbr.rel (0) target = $region17
    $region16: #{tpu_custom_call.1} parent=1 // pred_region
      %s60 = ssub.s32 16, 16
      %61 = vsyncadd [#allocation10], %s60
      %s63 = sshll.u32 [#allocation9], 4
      %s64 = int_to_ptr.vmem [resolvable:$true] %s63
      %66 = dma.hbm_to_vmem [thread:$0]  %s3, 16, %s64, [#allocation10]
    $region17: #{tpu_custom_call.1} parent=1 // pred_fallthru
      _
    // Predicated region
    $region18: #{tpu_custom_call.1} parent=1 // pred_check
      _
    $region19: #{tpu_custom_call.1} parent=1 // pred_check_branch
      %68 = sbr.rel (0) target = $region21
    $region20: #{tpu_custom_call.1} parent=1 // pred_region
      %s70 = ssub.s32 640, 640
      %71 = vsyncadd [#allocation10], %s70
      %s72 = sshll.u32 [#allocation11], 4
      %s73 = int_to_ptr.vmem [resolvable:$true] %s72
      %78 = dma.hbm_to_vmem [thread:$0]  %s4, 640, %s73, [#allocation10], 128, 128, 8
    $region21: #{tpu_custom_call.1} parent=1 // pred_fallthru
      _
    // Predicated region
    $region22: #{tpu_custom_call.1} parent=1 // pred_check
      _
    $region23: #{tpu_custom_call.1} parent=1 // pred_check_branch
      %80 = sbr.rel (0) target = $region25
    $region24: #{tpu_custom_call.1} parent=1 // pred_region
      %s82 = ssub.s32 16, 16
      %83 = vsyncadd [#allocation13], %s82
      %s85 = sshll.u32 [#allocation12], 4
      %s86 = int_to_ptr.vmem [resolvable:$true] %s85
      %88 = dma.hbm_to_vmem [thread:$0]  %s5, 16, %s86, [#allocation13]
    $region25: #{tpu_custom_call.1} parent=1 // pred_fallthru
      _
    // Predicated region
    $region26: #{tpu_custom_call.1} parent=1 // pred_check
      _
    $region27: #{tpu_custom_call.1} parent=1 // pred_check_branch
      %90 = sbr.rel (0) target = $region29
    $region28: #{tpu_custom_call.1} parent=1 // pred_region
      %s92 = ssub.s32 2560, 2560
      %93 = vsyncadd [#allocation13], %s92
      %s94 = sshll.u32 [#allocation14], 4
      %s95 = int_to_ptr.vmem [resolvable:$true] %s94
      %100 = dma.hbm_to_vmem [thread:$0]  %s6, 2560, %s95, [#allocation13], 128, 128, 8
    $region29: #{tpu_custom_call.1} parent=1 // pred_fallthru
      _
    // Predicated region
    $region30: #{tpu_custom_call.1} parent=1 // pred_check
      _
    $region31: #{tpu_custom_call.1} parent=1 // pred_check_branch
      %102 = sbr.rel (0) target = $region33
    $region32: #{tpu_custom_call.1} parent=1 // pred_region
      %s104 = ssub.s32 16, 16
      %105 = vsyncadd [#allocation16], %s104
      %s107 = sshll.u32 [#allocation15], 4
      %s108 = int_to_ptr.vmem [resolvable:$true] %s107
      %110 = dma.hbm_to_vmem [thread:$0]  %s7, 16, %s108, [#allocation16]
    $region33: #{tpu_custom_call.1} parent=1 // pred_fallthru
      _
    // Predicated region
    $region34: #{tpu_custom_call.1} parent=1 // pred_check
      _
    $region35: #{tpu_custom_call.1} parent=1 // pred_check_branch
      %112 = sbr.rel (0) target = $region37
    $region36: #{tpu_custom_call.1} parent=1 // pred_region
      %s114 = ssub.s32 16, 16
      %115 = vsyncadd [#allocation16], %s114
      %s117 = sshll.u32 [#allocation17], 4
      %s118 = int_to_ptr.vmem [resolvable:$true] %s117
      %120 = dma.hbm_to_vmem [thread:$0]  %s8, 16, %s118, [#allocation16]
    $region37: #{tpu_custom_call.1} parent=1 // pred_fallthru
      _
    // Predicated region
    $region38: #{tpu_custom_call.1} parent=1 // pred_check
      _
    $region39: #{tpu_custom_call.1} parent=1 // pred_check_branch
      %122 = sbr.rel (0) target = $region41
    $region40: #{tpu_custom_call.1} parent=1 // pred_region
      _
    $region41: #{tpu_custom_call.1} parent=1 // pred_fallthru
      _
    // Predicated region
    $region42: #{tpu_custom_call.1} parent=1 // pred_check
      _
    $region43: #{tpu_custom_call.1} parent=1 // pred_check_branch
      %124 = sbr.rel (0) target = $region45
    $region44: #{tpu_custom_call.1} parent=1 // pred_region
      %125 = dma.done [#allocation4], 512
    $region45: #{tpu_custom_call.1} parent=1 // pred_fallthru
      _
    // Predicated region
    $region46: #{tpu_custom_call.1} parent=1 // pred_check
      _
    $region47: #{tpu_custom_call.1} parent=1 // pred_check_branch
      %127 = sbr.rel (0) target = $region49
    $region48: #{tpu_custom_call.1} parent=1 // pred_region
      %128 = dma.done [#allocation7], 32
    $region49: #{tpu_custom_call.1} parent=1 // pred_fallthru
      _
    // Predicated region
    $region50: #{tpu_custom_call.1} parent=1 // pred_check
      _
    $region51: #{tpu_custom_call.1} parent=1 // pred_check_branch
      %130 = sbr.rel (0) target = $region53
    $region52: #{tpu_custom_call.1} parent=1 // pred_region
      %131 = dma.done [#allocation7], 640
    $region53: #{tpu_custom_call.1} parent=1 // pred_fallthru
      _
    // Predicated region
    $region54: #{tpu_custom_call.1} parent=1 // pred_check
      _
    $region55: #{tpu_custom_call.1} parent=1 // pred_check_branch
      %133 = sbr.rel (0) target = $region57
    $region56: #{tpu_custom_call.1} parent=1 // pred_region
      %134 = dma.done [#allocation10], 16
    $region57: #{tpu_custom_call.1} parent=1 // pred_fallthru
      _
    // Predicated region
    $region58: #{tpu_custom_call.1} parent=1 // pred_check
      _
    $region59: #{tpu_custom_call.1} parent=1 // pred_check_branch
      %136 = sbr.rel (0) target = $region61
    $region60: #{tpu_custom_call.1} parent=1 // pred_region
      %137 = dma.done [#allocation10], 640
    $region61: #{tpu_custom_call.1} parent=1 // pred_fallthru
      _
    // Predicated region
    $region62: #{tpu_custom_call.1} parent=1 // pred_check
      _
    $region63: #{tpu_custom_call.1} parent=1 // pred_check_branch
      %139 = sbr.rel (0) target = $region65
    $region64: #{tpu_custom_call.1} parent=1 // pred_region
      %140 = dma.done [#allocation13], 16
    $region65: #{tpu_custom_call.1} parent=1 // pred_fallthru
      _
    // Predicated region
    $region66: #{tpu_custom_call.1} parent=1 // pred_check
      _
    $region67: #{tpu_custom_call.1} parent=1 // pred_check_branch
      %142 = sbr.rel (0) target = $region69
    $region68: #{tpu_custom_call.1} parent=1 // pred_region
      %143 = dma.done [#allocation13], 2560
    $region69: #{tpu_custom_call.1} parent=1 // pred_fallthru
      _
    // Predicated region
    $region70: #{tpu_custom_call.1} parent=1 // pred_check
      _
    $region71: #{tpu_custom_call.1} parent=1 // pred_check_branch
      %145 = sbr.rel (0) target = $region73
    $region72: #{tpu_custom_call.1} parent=1 // pred_region
      %146 = dma.done [#allocation16], 16
    $region73: #{tpu_custom_call.1} parent=1 // pred_fallthru
      _
    // Predicated region
    $region74: #{tpu_custom_call.1} parent=1 // pred_check
      _
    $region75: #{tpu_custom_call.1} parent=1 // pred_check_branch
      %148 = sbr.rel (0) target = $region77
    $region76: #{tpu_custom_call.1} parent=1 // pred_region
      %149 = dma.done [#allocation16], 16
    $region77: #{tpu_custom_call.1} parent=1 // pred_fallthru
      _
    %v150 = vld [vmem:[#allocation3] sm:$0xff]
    %v151 = vld [vmem:[#allocation3 + $0x8] sm:$0xff]
    %v152 = vld [vmem:[#allocation3 + $0x10] sm:$0xff]
    %v153 = vld [vmem:[#allocation3 + $0x18] sm:$0xff]
    %vm158 = vcmask 1040384
    %v159 = vrot.slane %v150, 7
    %v160 = vrot.slane %v151, 7
    %v161 = vsel %vm158, %v159, %v160
    %v162 = vrot.slane %v152, 7
    %v163 = vrot.slane %v153, 7
    %v164 = vsel %vm158, %v162, %v163
    %v169 = vsel %vm158, 0.0, %v159
    %v170 = vsel %vm158, 0.0, %v162
    %vm171 = vcmask 1046528
    %v172 = vrot.slane %v150, 1
    %v173 = vrot.slane %v151, 1
    %v174 = vsel %vm171, %v172, %v173
    %v175 = vrot.slane %v152, 1
    %v176 = vrot.slane %v153, 1
    %v177 = vsel %vm171, %v175, %v176
    %v180 = vsel %vm171, %v173, 0.0
    %v181 = vsel %vm171, %v176, 0.0
    %182 = vrot.lane.b32.xlu0 %v150, 12
    %v183 = vpop.permute.xlu0 %182
    %184 = vrot.lane.b32.xlu0 %v151, 12
    %v185 = vpop.permute.xlu0 %184
    %186 = vrot.lane.b32.xlu0 %v152, 12
    %v187 = vpop.permute.xlu0 %186
    %188 = vrot.lane.b32.xlu0 %v153, 12
    %v189 = vpop.permute.xlu0 %188
    %196 = vrot.lane.b32.xlu0 %v174, 24
    %v197 = vpop.permute.xlu0 %196
    %198 = vrot.lane.b32.xlu0 %v180, 24
    %v199 = vpop.permute.xlu0 %198
    %200 = vrot.lane.b32.xlu0 %v177, 24
    %v201 = vpop.permute.xlu0 %200
    %202 = vrot.lane.b32.xlu0 %v181, 24
    %v203 = vpop.permute.xlu0 %202
    %vm208 = vcmask 97280
    %v209 = vsel %vm208, %v169, %v183
    %v210 = vsel %vm208, %v161, %v185
    %v211 = vsel %vm208, %v170, %v187
    %v212 = vsel %vm208, %v164, %v189
    %vm213 = vcmask 195584
    %v214 = vsel %vm213, %v209, %v197
    %v215 = vsel %vm213, %v210, %v199
    %v216 = vsel %vm213, %v211, %v201
    %v217 = vsel %vm213, %v212, %v203
    %v218 = vld [vmem:[#allocation8] sm:$0xff]
    %v219 = vld [vmem:[#allocation8 + $0x8] sm:$0xff]
    %v220 = vld [vmem:[#allocation8 + $0x10] sm:$0xff]
    %v221 = vld [vmem:[#allocation8 + $0x18] sm:$0xff]
    %v222 = vld [vmem:[#allocation8 + $0x20] sm:$0xf]
    %v223 = vld [vmem:[#allocation9] sm:$0x1]
    %v225 = vlaneseq
    %v226 = vshrl.u32 %v225, 7
    %v227 = vsub.s32 0, %v226
    %v228 = vrot.slane %v223, %v227
    %vm230 = vcmask 293888
    %v232 = vsel %vm230, %v214, 0
    %v235 = vsel %vm230, %v215, 0
    %v238 = vsel %vm230, %v216, 0
    %v241 = vsel %vm230, %v217, 0
    %vm243 = vcmask 1043456
    %v245 = vsel %vm243, %v222, 0
    %247 = vmatprep.subr.mxu0 0.0
    %248 = vmatpush1.msra.mxu0 %v218
    %249 = vmatprep.subr.mxu0 0.0
    %250 = vmatpush1.msra.mxu0 %v219
    %251 = vmatprep.subr.mxu0 0.0
    %252 = vmatpush1.msra.mxu0 %v220
    %253 = vmatprep.subr.mxu0 0.0
    %254 = vmatpush1.msra.mxu0 %v221
    %255 = vmatprep.subr.mxu0 0.0
    %256 = vmatpush1.msra.mxu0 %v245
    %257 = vmatprep.subr.mxu0 0.0
    %258 = vmatpush1.msra.mxu0 0.0
    %259 = vmatprep.subr.mxu0 0.0
    %260 = vmatpush1.msra.mxu0 0.0
    %261 = vmatprep.subr.mxu0 0.0
    %262 = vmatpush1.msra.mxu0 0.0
    %263 = vmatprep.subr.mxu0 0.0
    %264 = vmatpush1.msra.mxu0 0.0
    %265 = vmatprep.subr.mxu0 0.0
    %266 = vmatpush1.msra.mxu0 0.0
    %267 = vmatprep.subr.mxu0 0.0
    %268 = vmatpush1.msra.mxu0 0.0
    %269 = vmatprep.subr.mxu0 0.0
    %270 = vmatpush1.msra.mxu0 0.0
    %271 = vmatprep.subr.mxu0 0.0
    %272 = vmatpush1.msra.mxu0 0.0
    %273 = vmatprep.subr.mxu0 0.0
    %274 = vmatpush1.msra.mxu0 0.0
    %275 = vmatprep.subr.mxu0 0.0
    %276 = vmatpush1.msra.mxu0 0.0
    %277 = vmatprep.subr.mxu0 0.0
    %278 = vmatpush1.msra.mxu0 0.0
    %279 = vmatprep.subr.mxu0 0.0
    %280 = vmatpush1.msra.mxu0 0.0
    %281 = vmatprep.subr.mxu0 0.0
    %282 = vmatpush1.msra.mxu0 0.0
    %283 = vmatprep.subr.mxu0 0.0
    %284 = vmatpush1.msra.mxu0 0.0
    %285 = vmatprep.subr.mxu0 0.0
    %286 = vmatpush1.msra.mxu0 0.0
    %287 = vmatprep.subr.mxu0 0.0
    %288 = vmatpush1.msra.mxu0 0.0
    %289 = vmatprep.subr.mxu0 0.0
    %290 = vmatpush1.msra.mxu0 0.0
    %291 = vmatprep.subr.mxu0 0.0
    %292 = vmatpush1.msra.mxu0 0.0
    %293 = vmatprep.subr.mxu0 0.0
    %294 = vmatpush1.msra.mxu0 0.0
    %295 = vmatprep.subr.mxu0 0.0
    %296 = vmatpush1.msra.mxu0 0.0
    %297 = vmatprep.subr.mxu0 0.0
    %298 = vmatpush1.msra.mxu0 0.0
    %299 = vmatprep.subr.mxu0 0.0
    %300 = vmatpush1.msra.mxu0 0.0
    %301 = vmatprep.subr.mxu0 0.0
    %302 = vmatpush1.msra.mxu0 0.0
    %303 = vmatprep.subr.mxu0 0.0
    %304 = vmatpush1.msra.mxu0 0.0
    %305 = vmatprep.subr.mxu0 0.0
    %306 = vmatpush1.msra.mxu0 0.0
    %307 = vmatprep.subr.mxu0 0.0
    %308 = vmatpush1.msra.mxu0 0.0
    %309 = vmatprep.subr.mxu0 0.0
    %310 = vmatpush1.msra.mxu0 0.0
    %311 = vmatprep.mubr.f32.mxu0 0.0
    %312 = vmatmul.mubr.f32.gmra.mrb[0].mxu0 %v232
    %v313 = vpop.f32.mrb[0].mxu0
    %v314 = vadd.f32 %v228, %v313
    %v315 = vpop.f32.mrb[0].mxu0
    %316 = vmatprep.mubr.f32.mxu0 0.0
    %317 = vmatmul.mubr.f32.gmra.mrb[0].mxu0 %v235
    %v318 = vpop.f32.mrb[0].mxu0
    %v319 = vadd.f32 %v228, %v318
    %v320 = vpop.f32.mrb[0].mxu0
    %321 = vmatprep.mubr.f32.mxu0 0.0
    %322 = vmatmul.mubr.f32.gmra.mrb[0].mxu0 %v238
    %v323 = vpop.f32.mrb[0].mxu0
    %v324 = vadd.f32 %v228, %v323
    %v325 = vpop.f32.mrb[0].mxu0
    %326 = vmatprep.mubr.f32.mxu0 0.0
    %327 = vmatmul.mubr.f32.gmra.mrb[0].mxu0 %v241
    %v328 = vpop.f32.mrb[0].mxu0
    %v329 = vadd.f32 %v228, %v328
    %v330 = vpop.f32.mrb[0].mxu0
    %331 = vdwg.mxu0
    %v332 = vmax.f32 %v314, 0.0
    %v333 = vmax.f32 %v319, 0.0
    %v334 = vmax.f32 %v324, 0.0
    %v335 = vmax.f32 %v329, 0.0
    %vm336 = vcmask 785408
    %v337 = vsel %vm336, %v332, 0.0
    %v338 = vsel %vm336, %v333, 0.0
    %v339 = vadd.f32 %v337, %v338
    %v340 = vrot.slane %v339, 4
    %v341 = vadd.f32 %v339, %v340
    %v342 = vrot.slane %v341, 2
    %v343 = vadd.f32 %v341, %v342
    %v344 = vrot.slane %v343, 1
    %v345 = vadd.f32 %v343, %v344
    %v346 = vsel %vm336, %v334, 0.0
    %v347 = vsel %vm336, %v335, 0.0
    %v348 = vadd.f32 %v346, %v347
    %v349 = vrot.slane %v348, 4
    %v350 = vadd.f32 %v348, %v349
    %v351 = vrot.slane %v350, 2
    %v352 = vadd.f32 %v350, %v351
    %v353 = vrot.slane %v352, 1
    %v354 = vadd.f32 %v352, %v353
    %v355 = vrcp.pop 16.0
    %v356 = vmul.f32 %v345, %v355
    %v357 = vmul.f32 %v354, %v355
    %v358 = vld [vmem:[#allocation6] sm:$0x3]
    %v359 = vld [vmem:[#allocation11] sm:$0xff]
    %v360 = vld [vmem:[#allocation11 + $0x8] sm:$0xff]
    %v361 = vld [vmem:[#allocation11 + $0x10] sm:$0xff]
    %v362 = vld [vmem:[#allocation11 + $0x18] sm:$0xff]
    %v363 = vld [vmem:[#allocation11 + $0x20] sm:$0xf]
    %v364 = vld [vmem:[#allocation12] sm:$0x1]
    %v366 = vlaneseq
    %v367 = vshrl.u32 %v366, 7
    %v368 = vsub.s32 0, %v367
    %v369 = vrot.slane %v364, %v368
    %v372 = vsel %vm230, %v358, 0
    %v375 = vsel %vm243, %v363, 0
    %377 = vmatprep.subr.mxu0 0.0
    %378 = vmatpush1.msra.mxu0 %v359
    %379 = vmatprep.subr.mxu0 0.0
    %380 = vmatpush1.msra.mxu0 %v360
    %381 = vmatprep.subr.mxu0 0.0
    %382 = vmatpush1.msra.mxu0 %v361
    %383 = vmatprep.subr.mxu0 0.0
    %384 = vmatpush1.msra.mxu0 %v362
    %385 = vmatprep.subr.mxu0 0.0
    %386 = vmatpush1.msra.mxu0 %v375
    %387 = vmatprep.subr.mxu0 0.0
    %388 = vmatpush1.msra.mxu0 0.0
    %389 = vmatprep.subr.mxu0 0.0
    %390 = vmatpush1.msra.mxu0 0.0
    %391 = vmatprep.subr.mxu0 0.0
    %392 = vmatpush1.msra.mxu0 0.0
    %393 = vmatprep.subr.mxu0 0.0
    %394 = vmatpush1.msra.mxu0 0.0
    %395 = vmatprep.subr.mxu0 0.0
    %396 = vmatpush1.msra.mxu0 0.0
    %397 = vmatprep.subr.mxu0 0.0
    %398 = vmatpush1.msra.mxu0 0.0
    %399 = vmatprep.subr.mxu0 0.0
    %400 = vmatpush1.msra.mxu0 0.0
    %401 = vmatprep.subr.mxu0 0.0
    %402 = vmatpush1.msra.mxu0 0.0
    %403 = vmatprep.subr.mxu0 0.0
    %404 = vmatpush1.msra.mxu0 0.0
    %405 = vmatprep.subr.mxu0 0.0
    %406 = vmatpush1.msra.mxu0 0.0
    %407 = vmatprep.subr.mxu0 0.0
    %408 = vmatpush1.msra.mxu0 0.0
    %409 = vmatprep.subr.mxu0 0.0
    %410 = vmatpush1.msra.mxu0 0.0
    %411 = vmatprep.subr.mxu0 0.0
    %412 = vmatpush1.msra.mxu0 0.0
    %413 = vmatprep.subr.mxu0 0.0
    %414 = vmatpush1.msra.mxu0 0.0
    %415 = vmatprep.subr.mxu0 0.0
    %416 = vmatpush1.msra.mxu0 0.0
    %417 = vmatprep.subr.mxu0 0.0
    %418 = vmatpush1.msra.mxu0 0.0
    %419 = vmatprep.subr.mxu0 0.0
    %420 = vmatpush1.msra.mxu0 0.0
    %421 = vmatprep.subr.mxu0 0.0
    %422 = vmatpush1.msra.mxu0 0.0
    %423 = vmatprep.subr.mxu0 0.0
    %424 = vmatpush1.msra.mxu0 0.0
    %425 = vmatprep.subr.mxu0 0.0
    %426 = vmatpush1.msra.mxu0 0.0
    %427 = vmatprep.subr.mxu0 0.0
    %428 = vmatpush1.msra.mxu0 0.0
    %429 = vmatprep.subr.mxu0 0.0
    %430 = vmatpush1.msra.mxu0 0.0
    %431 = vmatprep.subr.mxu0 0.0
    %432 = vmatpush1.msra.mxu0 0.0
    %433 = vmatprep.subr.mxu0 0.0
    %434 = vmatpush1.msra.mxu0 0.0
    %435 = vmatprep.subr.mxu0 0.0
    %436 = vmatpush1.msra.mxu0 0.0
    %437 = vmatprep.subr.mxu0 0.0
    %438 = vmatpush1.msra.mxu0 0.0
    %439 = vmatprep.subr.mxu0 0.0
    %440 = vmatpush1.msra.mxu0 0.0
    %441 = vmatprep.mubr.f32.mxu0 0.0
    %442 = vmatmul.mubr.f32.gmra.mrb[0].mxu0 %v372
    %v443 = vpop.f32.mrb[0].mxu0
    %v444 = vadd.f32 %v369, %v443
    %v445 = vpop.f32.mrb[0].mxu0
    %446 = vdwg.mxu0
    %v447 = vmax.f32 %v444, 0.0
    %v448 = vld [vmem:[#allocation14] sm:$0xff]
    %v449 = vld [vmem:[#allocation14 + $0x8] sm:$0xff]
    %v450 = vld [vmem:[#allocation14 + $0x10] sm:$0xff]
    %v451 = vld [vmem:[#allocation14 + $0x18] sm:$0xff]
    %v452 = vld [vmem:[#allocation14 + $0x20] sm:$0xff]
    %v453 = vld [vmem:[#allocation14 + $0x28] sm:$0xff]
    %v454 = vld [vmem:[#allocation14 + $0x30] sm:$0xff]
    %v455 = vld [vmem:[#allocation14 + $0x38] sm:$0xff]
    %v456 = vld [vmem:[#allocation14 + $0x40] sm:$0xff]
    %v457 = vld [vmem:[#allocation14 + $0x48] sm:$0xff]
    %v458 = vld [vmem:[#allocation14 + $0x50] sm:$0xff]
    %v459 = vld [vmem:[#allocation14 + $0x58] sm:$0xff]
    %v460 = vld [vmem:[#allocation14 + $0x60] sm:$0xff]
    %v461 = vld [vmem:[#allocation14 + $0x68] sm:$0xff]
    %v462 = vld [vmem:[#allocation14 + $0x70] sm:$0xff]
    %v463 = vld [vmem:[#allocation14 + $0x78] sm:$0xff]
    %v464 = vld [vmem:[#allocation14 + $0x80] sm:$0xff]
    %v465 = vld [vmem:[#allocation14 + $0x88] sm:$0xff]
    %v466 = vld [vmem:[#allocation14 + $0x90] sm:$0xff]
    %v467 = vld [vmem:[#allocation14 + $0x98] sm:$0xff]
    %vm468 = vcmask 523264
    %v470 = vsel %vm468, %v447, 0
    %472 = vmatprep.subr.mxu0 0.0
    %473 = vmatpush1.msra.mxu0 %v460
    %474 = vmatprep.subr.mxu0 0.0
    %475 = vmatpush1.msra.mxu0 %v461
    %476 = vmatprep.subr.mxu0 0.0
    %477 = vmatpush1.msra.mxu0 %v462
    %478 = vmatprep.subr.mxu0 0.0
    %479 = vmatpush1.msra.mxu0 %v463
    %480 = vmatprep.subr.mxu0 0.0
    %481 = vmatpush1.msra.mxu0 %v464
    %482 = vmatprep.subr.mxu0 0.0
    %483 = vmatpush1.msra.mxu0 %v465
    %484 = vmatprep.subr.mxu0 0.0
    %485 = vmatpush1.msra.mxu0 %v466
    %486 = vmatprep.subr.mxu0 0.0
    %487 = vmatpush1.msra.mxu0 %v467
    %488 = vmatprep.subr.mxu0 0.0
    %489 = vmatpush1.msra.mxu0 0.0
    %490 = vmatprep.subr.mxu0 0.0
    %491 = vmatpush1.msra.mxu0 0.0
    %492 = vmatprep.subr.mxu0 0.0
    %493 = vmatpush1.msra.mxu0 0.0
    %494 = vmatprep.subr.mxu0 0.0
    %495 = vmatpush1.msra.mxu0 0.0
    %496 = vmatprep.subr.mxu0 0.0
    %497 = vmatpush1.msra.mxu0 0.0
    %498 = vmatprep.subr.mxu0 0.0
    %499 = vmatpush1.msra.mxu0 0.0
    %500 = vmatprep.subr.mxu0 0.0
    %501 = vmatpush1.msra.mxu0 0.0
    %502 = vmatprep.subr.mxu0 0.0
    %503 = vmatpush1.msra.mxu0 0.0
    %504 = vmatprep.subr.mxu0 0.0
    %505 = vmatpush1.msra.mxu0 0.0
    %506 = vmatprep.subr.mxu0 0.0
    %507 = vmatpush1.msra.mxu0 0.0
    %508 = vmatprep.subr.mxu0 0.0
    %509 = vmatpush1.msra.mxu0 0.0
    %510 = vmatprep.subr.mxu0 0.0
    %511 = vmatpush1.msra.mxu0 0.0
    %512 = vmatprep.subr.mxu0 0.0
    %513 = vmatpush1.msra.mxu0 0.0
    %514 = vmatprep.subr.mxu0 0.0
    %515 = vmatpush1.msra.mxu0 0.0
    %516 = vmatprep.subr.mxu0 0.0
    %517 = vmatpush1.msra.mxu0 0.0
    %518 = vmatprep.subr.mxu0 0.0
    %519 = vmatpush1.msra.mxu0 0.0
    %520 = vmatprep.subr.mxu0 0.0
    %521 = vmatpush1.msra.mxu0 0.0
    %522 = vmatprep.subr.mxu0 0.0
    %523 = vmatpush1.msra.mxu0 0.0
    %524 = vmatprep.subr.mxu0 0.0
    %525 = vmatpush1.msra.mxu0 0.0
    %526 = vmatprep.subr.mxu0 0.0
    %527 = vmatpush1.msra.mxu0 0.0
    %528 = vmatprep.subr.mxu0 0.0
    %529 = vmatpush1.msra.mxu0 0.0
    %530 = vmatprep.subr.mxu0 0.0
    %531 = vmatpush1.msra.mxu0 0.0
    %532 = vmatprep.subr.mxu0 0.0
    %533 = vmatpush1.msra.mxu0 0.0
    %534 = vmatprep.subr.mxu0 0.0
    %535 = vmatpush1.msra.mxu0 0.0
    %536 = vmatprep.mubr.f32.mxu0 0.0
    %537 = vmatmul.mubr.f32.gmra.mrb[0].mxu0 %v470
    %v538 = vpop.f32.mrb[0].mxu0
    %v539 = vadd.f32 0.0, %v538
    %v540 = vpop.f32.mrb[0].mxu0
    %541 = vdwg.mxu0
    %vm544 = vcmask 1041409
    %v545 = vsel %vm544, %v357, %v356
    %v546 = vsel %vm336, %v545, 0
    %548 = vmatprep.subr.mxu0 0.0
    %549 = vmatpush1.msra.mxu0 %v448
    %550 = vmatprep.subr.mxu0 0.0
    %551 = vmatpush1.msra.mxu0 %v449
    %552 = vmatprep.subr.mxu0 0.0
    %553 = vmatpush1.msra.mxu0 %v450
    %554 = vmatprep.subr.mxu0 0.0
    %555 = vmatpush1.msra.mxu0 %v451
    %556 = vmatprep.subr.mxu0 0.0
    %557 = vmatpush1.msra.mxu0 %v452
    %558 = vmatprep.subr.mxu0 0.0
    %559 = vmatpush1.msra.mxu0 %v453
    %560 = vmatprep.subr.mxu0 0.0
    %561 = vmatpush1.msra.mxu0 %v454
    %562 = vmatprep.subr.mxu0 0.0
    %563 = vmatpush1.msra.mxu0 %v455
    %564 = vmatprep.subr.mxu0 0.0
    %565 = vmatpush1.msra.mxu0 %v456
    %566 = vmatprep.subr.mxu0 0.0
    %567 = vmatpush1.msra.mxu0 %v457
    %568 = vmatprep.subr.mxu0 0.0
    %569 = vmatpush1.msra.mxu0 %v458
    %570 = vmatprep.subr.mxu0 0.0
    %571 = vmatpush1.msra.mxu0 %v459
    %572 = vmatprep.subr.mxu0 0.0
    %573 = vmatpush1.msra.mxu0 0.0
    %574 = vmatprep.subr.mxu0 0.0
    %575 = vmatpush1.msra.mxu0 0.0
    %576 = vmatprep.subr.mxu0 0.0
    %577 = vmatpush1.msra.mxu0 0.0
    %578 = vmatprep.subr.mxu0 0.0
    %579 = vmatpush1.msra.mxu0 0.0
    %580 = vmatprep.subr.mxu0 0.0
    %581 = vmatpush1.msra.mxu0 0.0
    %582 = vmatprep.subr.mxu0 0.0
    %583 = vmatpush1.msra.mxu0 0.0
    %584 = vmatprep.subr.mxu0 0.0
    %585 = vmatpush1.msra.mxu0 0.0
    %586 = vmatprep.subr.mxu0 0.0
    %587 = vmatpush1.msra.mxu0 0.0
    %588 = vmatprep.subr.mxu0 0.0
    %589 = vmatpush1.msra.mxu0 0.0
    %590 = vmatprep.subr.mxu0 0.0
    %591 = vmatpush1.msra.mxu0 0.0
    %592 = vmatprep.subr.mxu0 0.0
    %593 = vmatpush1.msra.mxu0 0.0
    %594 = vmatprep.subr.mxu0 0.0
    %595 = vmatpush1.msra.mxu0 0.0
    %596 = vmatprep.subr.mxu0 0.0
    %597 = vmatpush1.msra.mxu0 0.0
    %598 = vmatprep.subr.mxu0 0.0
    %599 = vmatpush1.msra.mxu0 0.0
    %600 = vmatprep.subr.mxu0 0.0
    %601 = vmatpush1.msra.mxu0 0.0
    %602 = vmatprep.subr.mxu0 0.0
    %603 = vmatpush1.msra.mxu0 0.0
    %604 = vmatprep.subr.mxu0 0.0
    %605 = vmatpush1.msra.mxu0 0.0
    %606 = vmatprep.subr.mxu0 0.0
    %607 = vmatpush1.msra.mxu0 0.0
    %608 = vmatprep.subr.mxu0 0.0
    %609 = vmatpush1.msra.mxu0 0.0
    %610 = vmatprep.subr.mxu0 0.0
    %611 = vmatpush1.msra.mxu0 0.0
    %612 = vmatprep.mubr.f32.mxu0 0.0
    %613 = vmatmul.mubr.f32.gmra.mrb[0].mxu0 %v546
    %v614 = vpop.f32.mrb[0].mxu0
    %v615 = vadd.f32 %v539, %v614
    %v616 = vpop.f32.mrb[0].mxu0
    %617 = vdwg.mxu0
    %v618 = vld [vmem:[#allocation15] sm:$0x1]
    %v620 = vlaneseq
    %v621 = vshrl.u32 %v620, 7
    %v622 = vsub.s32 0, %v621
    %v623 = vrot.slane %v618, %v622
    %v625 = vadd.f32 %v615, %v623
    %v626 = vmax.f32 %v625, 0.0
    %v627 = vld [vmem:[#allocation17] sm:$0x1]
    %v628 = vld [vmem:[#allocation2] sm:$0x1]
    %630 = vset.pattern.permute.xlu0 0
    %631 = vperm.xlu0 %630, %v628
    %v632 = vpop.permute.xlu0 %631
    %v634 = vlaneseq
    %v635 = vshrl.u32 %v634, 7
    %v636 = vsub.s32 0, %v635
    %v637 = vrot.slane %v632, %v636
    %638 = vmatprep.subr.mxu0 0.0
    %639 = vmatpush1.xpose.msra.mxu0 %v626
    %640 = vmatprep.subr.mxu0 0.0
    %641 = vmatpush1.xpose.msra.mxu0 0.0
    %642 = vmatprep.subr.mxu0 0.0
    %643 = vmatpush1.xpose.msra.mxu0 0.0
    %644 = vmatprep.subr.mxu0 0.0
    %645 = vmatpush1.xpose.msra.mxu0 0.0
    %646 = vmatprep.subr.mxu0 0.0
    %647 = vmatpush1.xpose.msra.mxu0 0.0
    %648 = vmatprep.subr.mxu0 0.0
    %649 = vmatpush1.xpose.msra.mxu0 0.0
    %650 = vmatprep.subr.mxu0 0.0
    %651 = vmatpush1.xpose.msra.mxu0 0.0
    %652 = vmatprep.subr.mxu0 0.0
    %653 = vmatpush1.xpose.msra.mxu0 0.0
    %654 = vmatprep.subr.mxu0 0.0
    %655 = vmatpush1.xpose.msra.mxu0 0.0
    %656 = vmatprep.subr.mxu0 0.0
    %657 = vmatpush1.xpose.msra.mxu0 0.0
    %658 = vmatprep.subr.mxu0 0.0
    %659 = vmatpush1.xpose.msra.mxu0 0.0
    %660 = vmatprep.subr.mxu0 0.0
    %661 = vmatpush1.xpose.msra.mxu0 0.0
    %662 = vmatprep.subr.mxu0 0.0
    %663 = vmatpush1.xpose.msra.mxu0 0.0
    %664 = vmatprep.subr.mxu0 0.0
    %665 = vmatpush1.xpose.msra.mxu0 0.0
    %666 = vmatprep.subr.mxu0 0.0
    %667 = vmatpush1.xpose.msra.mxu0 0.0
    %668 = vmatprep.subr.mxu0 0.0
    %669 = vmatpush1.xpose.msra.mxu0 0.0
    %670 = vmatprep.subr.mxu0 0.0
    %671 = vmatpush1.xpose.msra.mxu0 0.0
    %672 = vmatprep.subr.mxu0 0.0
    %673 = vmatpush1.xpose.msra.mxu0 0.0
    %674 = vmatprep.subr.mxu0 0.0
    %675 = vmatpush1.xpose.msra.mxu0 0.0
    %676 = vmatprep.subr.mxu0 0.0
    %677 = vmatpush1.xpose.msra.mxu0 0.0
    %678 = vmatprep.subr.mxu0 0.0
    %679 = vmatpush1.xpose.msra.mxu0 0.0
    %680 = vmatprep.subr.mxu0 0.0
    %681 = vmatpush1.xpose.msra.mxu0 0.0
    %682 = vmatprep.subr.mxu0 0.0
    %683 = vmatpush1.xpose.msra.mxu0 0.0
    %684 = vmatprep.subr.mxu0 0.0
    %685 = vmatpush1.xpose.msra.mxu0 0.0
    %686 = vmatprep.subr.mxu0 0.0
    %687 = vmatpush1.xpose.msra.mxu0 0.0
    %688 = vmatprep.subr.mxu0 0.0
    %689 = vmatpush1.xpose.msra.mxu0 0.0
    %690 = vmatprep.subr.mxu0 0.0
    %691 = vmatpush1.xpose.msra.mxu0 0.0
    %692 = vmatprep.subr.mxu0 0.0
    %693 = vmatpush1.xpose.msra.mxu0 0.0
    %694 = vmatprep.subr.mxu0 0.0
    %695 = vmatpush1.xpose.msra.mxu0 0.0
    %696 = vmatprep.subr.mxu0 0.0
    %697 = vmatpush1.xpose.msra.mxu0 0.0
    %698 = vmatprep.subr.mxu0 0.0
    %699 = vmatpush1.xpose.msra.mxu0 0.0
    %700 = vmatprep.subr.mxu0 0.0
    %701 = vmatpush1.xpose.msra.mxu0 0.0
    %702 = vmatprep.mubr.f32.mxu0 0.0
    %703 = vmatmul.mubr.f32.gmra.mrb[0].mxu0 %v627
    %v704 = vpop.f32.mrb[0].mxu0
    %v705 = vadd.f32 %v637, %v704
    %v706 = vpop.f32.mrb[0].mxu0
    %707 = vdwg.mxu0
    %v708 = vxor.u32 %v705, 2147483648
    %v709 = vmul.f32 %v708, 1.442695
    %v710 = vpow.pop %v709
    %v711 = vadd.f32 %v710, 1.0
    %v712 = vrcp.pop %v711
    %v713 = vmul.f32 1.0, %v712
    %vm714 = vcmask 8192
    %715 = vst.msk [vmem:[#allocation18] sm:$0x1] %vm714, %v713
    // Predicated region
    $region78: #{tpu_custom_call.1} parent=1 // pred_check
      _
    $region79: #{tpu_custom_call.1} parent=1 // pred_check_branch
      %717 = sbr.rel (0) target = $region81
    $region80: #{tpu_custom_call.1} parent=1 // pred_region
      %s719 = ssub.s32 16, 16
      %720 = vsyncadd [#allocation5], %s719
      %s722 = sshll.u32 [#allocation18], 4
      %s723 = int_to_ptr.vmem [resolvable:$true] %s722
      %725 = dma.vmem_to_hbm [thread:$0]  %s723, 16, %s10, [#allocation5]
    $region81: #{tpu_custom_call.1} parent=1 // pred_fallthru
      _
    // Predicated region
    $region82: #{tpu_custom_call.1} parent=1 // pred_check
      _
    $region83: #{tpu_custom_call.1} parent=1 // pred_check_branch
      %727 = sbr.rel (0) target = $region85
    $region84: #{tpu_custom_call.1} parent=1 // pred_region
      %728 = dma.done [#allocation5], 16
    $region85: #{tpu_custom_call.1} parent=1 // pred_fallthru
      _
    %729 = vsyncpa [#allocation4], 1
    %730 = vsyncpa [#allocation7], 1
    %731 = vsyncpa [#allocation10], 1
    %732 = vsyncpa [#allocation13], 1
    %733 = vsyncpa [#allocation16], 1
    %734 = vsyncpa [#allocation5], 1

</llo_original>
